<compile_context>
chip_gen: v5e
topology: v5e:2x2
jax: 0.10.0
libtpu: 0.0.40
codegen_flags: <defaults>
</compile_context>

<pallas_src>
import functools

import jax
import jax.numpy as jnp
from jax import lax
from jax.experimental import pallas as pl
from jax.experimental.pallas import tpu as pltpu

EPS = 1e-5


# ------------------------------------------------------------------ helpers
def _round_up(n, m):
    return (n + m - 1) // m * m


def _pad2(a, rows, cols, dtype=None):
    a = jnp.pad(a, ((0, rows - a.shape[0]), (0, cols - a.shape[1])))
    return a if dtype is None else a.astype(dtype)


def _vmem_capacity_bytes():
    """Physical VMEM per TensorCore; conservative fallback if query fails."""
    try:
        return int(pltpu.get_tpu_info().vmem_capacity_bytes)
    except Exception:
        return 64 << 20      # safe for every generation (v7x has 64 MiB)


def _softmax_lanes(logits, out_dim):
    """Row softmax over the first `out_dim` lanes of a 128-padded tile."""
    if out_dim < logits.shape[-1]:
        col = lax.broadcasted_iota(jnp.int32, logits.shape, 1)
        logits = jnp.where(col < out_dim, logits, -1e30)
    logits = logits - jnp.max(logits, axis=-1, keepdims=True)
    e = jnp.exp(logits)
    denom = jnp.sum(e, axis=-1, keepdims=True)
    r = pl.reciprocal(denom, approx=True)      # EUP vrcp (free slot)
    r = r * (2.0 - denom * r)                  # one Newton step -> f32 accuracy
    return e * r


# ------------------------------------------------------- fast path (no grid)
def _fused_kernel(x_ref, w1_ref, g1_ref, be1_ref, w2_ref, g2_ref, be2_ref,
                  w3_ref, b3_ref, o_ref, *, batch, out_dim, mask_rows):
    """Whole problem resident in VMEM: one invocation, each matmul once."""
    f32 = jnp.float32
    inv_b = 1.0 / batch

    x = x_ref[...]
    if mask_rows:
        row = lax.broadcasted_iota(jnp.int32, (x.shape[0], 1), 0)
        valid = row < batch

    # Layer 1: Linear (bias cancels under BN) -> BatchNorm -> ReLU
    a1 = jnp.dot(x, w1_ref[...], preferred_element_type=f32)
    mean1 = jnp.sum(a1, axis=0, keepdims=True) * inv_b   # padded rows are 0
    d1 = a1 - mean1
    if mask_rows:
        d1 = jnp.where(valid, d1, 0.0)
    var1 = jnp.sum(d1 * d1, axis=0, keepdims=True) * inv_b   # two-pass, exact
    h1 = jnp.maximum(d1 * (g1_ref[...] * lax.rsqrt(var1 + EPS)) + be1_ref[...], 0.0)
    if mask_rows:
        h1 = jnp.where(valid, h1, 0.0)        # keep layer-2 stats exact

    # Layer 2
    a2 = jnp.dot(h1.astype(w2_ref.dtype), w2_ref[...], preferred_element_type=f32)
    mean2 = jnp.sum(a2, axis=0, keepdims=True) * inv_b
    d2 = a2 - mean2
    if mask_rows:
        d2 = jnp.where(valid, d2, 0.0)
    var2 = jnp.sum(d2 * d2, axis=0, keepdims=True) * inv_b
    h2 = jnp.maximum(d2 * (g2_ref[...] * lax.rsqrt(var2 + EPS)) + be2_ref[...], 0.0)

    # Layer 3 + softmax
    logits = jnp.dot(h2.astype(w3_ref.dtype), w3_ref[...],
                     preferred_element_type=f32) + b3_ref[...]
    o_ref[...] = _softmax_lanes(logits, out_dim).astype(o_ref.dtype)


# --------------------------------------------------- tiled 3-sweep path
def _tiled_kernel(x_ref, w1_ref, g1_ref, be1_ref, w2_ref, g2_ref, be2_ref,
                  w3_ref, b3_ref, o_ref,
                  sum1, sq1, sum2, sq2, *maybe_stash,
                  batch, tile, out_dim, mask_rows, use_stash):
    """grid = (3 sweeps, n batch tiles).

    sweep 0: a1 = x@w1, accumulate layer-1 sum/sumsq, stash a1
    sweep 1: h1 = BN+ReLU(a1); a2 = h1@w2; accumulate layer-2 stats; stash a2
    sweep 2: h2 = BN+ReLU(a2); logits; softmax; store output tile
    """
    s = pl.program_id(0)
    i = pl.program_id(1)
    f32 = jnp.float32
    inv_b = 1.0 / batch
    a_stash = maybe_stash[0] if use_stash else None

    # ---------------- sweep 0: layer-1 statistics ---------------------------
    @pl.when(s == 0)
    def _():
        @pl.when(i == 0)
        def _():
            sum1[...] = jnp.zeros_like(sum1)
            sq1[...] = jnp.zeros_like(sq1)
        a1 = jnp.dot(x_ref[...], w1_ref[...], preferred_element_type=f32)
        # Padded batch rows contribute exactly 0 (zero x rows, no bias).
        sum1[...] += jnp.sum(a1, axis=0, keepdims=True)
        sq1[...] += jnp.sum(a1 * a1, axis=0, keepdims=True)
        if use_stash:
            a_stash[i] = a1

    # ---------------- sweep 1: layer-2 statistics ---------------------------
    @pl.when(s == 1)
    def _():
        @pl.when(i == 0)
        def _():
            sum2[...] = jnp.zeros_like(sum2)
            sq2[...] = jnp.zeros_like(sq2)
        mean1 = sum1[...] * inv_b
        var1 = sq1[...] * inv_b - mean1 * mean1
        scale1 = g1_ref[...] * lax.rsqrt(var1 + EPS)     # gamma folded in
        if use_stash:
            a1 = a_stash[i]
        else:
            a1 = jnp.dot(x_ref[...], w1_ref[...], preferred_element_type=f32)
        h1 = jnp.maximum((a1 - mean1) * scale1 + be1_ref[...], 0.0)
        if mask_rows:
            # Only the last tile has padded rows; single VPU select keeps the
            # layer-2 statistics exact.
            row = i * tile + lax.broadcasted_iota(jnp.int32, (tile, 1), 0)
            h1 = jnp.where(row < batch, h1, 0.0)
        a2 = jnp.dot(h1.astype(w2_ref.dtype), w2_ref[...],
                     preferred_element_type=f32)
        sum2[...] += jnp.sum(a2, axis=0, keepdims=True)
        sq2[...] += jnp.sum(a2 * a2, axis=0, keepdims=True)
        if use_stash:
            a_stash[i] = a2          # reuse the same stash slot

    # ---------------- sweep 2: normalize, project, softmax, store -----------
    @pl.when(s == 2)
    def _():
        mean2 = sum2[...] * inv_b
        var2 = sq2[...] * inv_b - mean2 * mean2
        scale2 = g2_ref[...] * lax.rsqrt(var2 + EPS)
        if use_stash:
            a2 = a_stash[i]
        else:
            mean1 = sum1[...] * inv_b
            var1 = sq1[...] * inv_b - mean1 * mean1
            scale1 = g1_ref[...] * lax.rsqrt(var1 + EPS)
            a1 = jnp.dot(x_ref[...], w1_ref[...], preferred_element_type=f32)
            h1 = jnp.maximum((a1 - mean1) * scale1 + be1_ref[...], 0.0)
            a2 = jnp.dot(h1.astype(w2_ref.dtype), w2_ref[...],
                         preferred_element_type=f32)
        h2 = jnp.maximum((a2 - mean2) * scale2 + be2_ref[...], 0.0)
        logits = jnp.dot(h2.astype(w3_ref.dtype), w3_ref[...],
                         preferred_element_type=f32) + b3_ref[...]
        o_ref[...] = _softmax_lanes(logits, out_dim).astype(o_ref.dtype)


# ------------------------------------------------------------------ wrapper
def perceptron_forward(x, params, *, batch_tile=None,
                       compute_dtype=jnp.float32, force_tiled=False):
    """Forward pass of the Perceptron.

    batch_tile defaults are generation-aware (512 on 128 MiB-VMEM parts such
    as v5e/v6e, 256 on 64 MiB parts such as v7x).  compute_dtype=jnp.bfloat16
    casts x / weights for MXU-native matmuls; BN statistics and softmax stay
    in f32.
    """
    B, in_dim = x.shape
    mid_dim = params["w1"].shape[1]
    out_dim = params["w3"].shape[1]
    dsz = jnp.dtype(compute_dtype).itemsize

    # Feature dims padded to lane width (128): dense MXU + unmasked vst.
    din = _round_up(in_dim, 128)
    dmid = _round_up(mid_dim, 128)
    dout = _round_up(out_dim, 128)

    cap = _vmem_capacity_bytes()
    if batch_tile is None:
        batch_tile = 512 if cap >= (96 << 20) else 256

    # Minimal-padding batch tiling (tile must be a multiple of 8 sublanes).
    n_tiles = -(-B // batch_tile)
    tb = _round_up(-(-B // n_tiles), 8)
    b_pad = tb * n_tiles
    mask_rows = b_pad > B

    xp = _pad2(x.astype(jnp.float32), b_pad, din, compute_dtype)
    w1 = _pad2(params["w1"], din, dmid, compute_dtype)
    w2 = _pad2(params["w2"], dmid, dmid, compute_dtype)
    w3 = _pad2(params["w3"], dmid, dout, compute_dtype)
    g1 = _pad2(params["g1"], 1, dmid)
    be1 = _pad2(params["be1"], 1, dmid)
    g2 = _pad2(params["g2"], 1, dmid)
    be2 = _pad2(params["be2"], 1, dmid)
    b3 = _pad2(params["b3"], 1, dout)
    operands = (xp, w1, g1, be1, w2, g2, be2, w3, b3)

    w_bytes = (dsz * (din * dmid + dmid * dmid + dmid * dout)
               + 4 * (4 * dmid + dout))

    # -------------------------------------------------------------- fast path
    fused_bytes = (b_pad * din * dsz + b_pad * dout * 4 + w_bytes
                   + 5 * b_pad * dmid * 4 + 2 * b_pad * dout * 4)
    if not force_tiled and fused_bytes <= cap // 2:
        vmem_limit = int(min(cap * 3 // 4,
                             max(32 << 20, 2 * fused_bytes + (8 << 20))))
        out = pl.pallas_call(
            functools.partial(_fused_kernel, batch=B, out_dim=out_dim,
                              mask_rows=mask_rows),
            out_shape=jax.ShapeDtypeStruct((b_pad, dout), jnp.float32),
            compiler_params=pltpu.CompilerParams(vmem_limit_bytes=vmem_limit),
        )(*operands)
        return out[:B, :out_dim]

    # ------------------------------------------------------------ tiled path
    stash_bytes = b_pad * dmid * 4
    tile_bytes = 2 * tb * din * dsz + 2 * tb * dout * 4 + 6 * tb * dmid * 4
    stats_bytes = 4 * dmid * 4
    # Use the VMEM activation stash (no matmul recompute) whenever it fits.
    use_stash = (w_bytes + tile_bytes + stash_bytes + stats_bytes
                 + (8 << 20)) <= cap * 3 // 4

    kernel = functools.partial(_tiled_kernel, batch=B, tile=tb,
                               out_dim=out_dim, mask_rows=mask_rows,
                               use_stash=use_stash)

    # x is only consumed on sweep 0 when the stash is in use: keep its block
    # index constant afterwards so it is DMA'd from HBM exactly once.
    if use_stash:
        x_map = lambda s, i: (jnp.where(s == 0, i, n_tiles - 1), 0)
    else:
        x_map = lambda s, i: (i, 0)
    # Output tiles are only produced on sweep 2: constant block index before
    # that means no stale writebacks during the statistics sweeps.
    out_map = lambda s, i: (jnp.where(s == 2, i, 0), 0)

    scratch = [pltpu.VMEM((1, dmid), jnp.float32)] * 4
    if use_stash:
        scratch = scratch + [pltpu.VMEM((n_tiles, tb, dmid), jnp.float32)]

    def _build_and_run(single_buffer):
        if single_buffer:
            # Grid-invariant operands: resident in VMEM, single-buffered.
            def const_spec(shape):
                return pl.BlockSpec(shape, lambda s, i: (0, 0),
                                    pipeline_mode=pl.Buffered(1))
        else:
            def const_spec(shape):
                return pl.BlockSpec(shape, lambda s, i: (0, 0))

        need = (w_bytes * (1 if single_buffer else 2) + tile_bytes
                + (stash_bytes if use_stash else 0) + stats_bytes)
        vmem_limit = int(min(cap * 3 // 4,
                             max(32 << 20, need + need // 2 + (8 << 20))))

        grid_spec = pltpu.PrefetchScalarGridSpec(
            num_scalar_prefetch=0,
            grid=(3, n_tiles),                    # (sweep, batch tile)
            in_specs=[
                pl.BlockSpec((tb, din), x_map),   # x (pipelined)
                const_spec((din, dmid)),          # w1
                const_spec((1, dmid)),            # gamma1
                const_spec((1, dmid)),            # beta1
                const_spec((dmid, dmid)),         # w2
                const_spec((1, dmid)),            # gamma2
                const_spec((1, dmid)),            # beta2
                const_spec((dmid, dout)),         # w3
                const_spec((1, dout)),            # b3
            ],
            out_specs=pl.BlockSpec((tb, dout), out_map),
            scratch_shapes=scratch,
        )
        out = pl.pallas_call(
            kernel,
            out_shape=jax.ShapeDtypeStruct((b_pad, dout), jnp.float32),
            grid_spec=grid_spec,
            compiler_params=pltpu.CompilerParams(
                # Full-batch BN statistics are carried in VMEM scratch across
                # tiles and sweeps, so both grid axes stay sequential.
                # TODO(synk): on v7x (2 TCs) split the tile axis across cores
                # with partial sums in VMEM_SHARED + core_barrier combine.
                dimension_semantics=("arbitrary", "arbitrary"),
                vmem_limit_bytes=vmem_limit,
            ),
        )(*operands)
        return jax.block_until_ready(out)

    try:
        out = _build_and_run(single_buffer=True)
    except Exception:
        # pipeline_mode=pl.Buffered(1) not supported on this jax build: fall
        # back to default (double-buffered) resident weights.
        out = _build_and_run(single_buffer=False)
    return out[:B, :out_dim]


# --------------------------------------------------------------- init / ref
def init_params(key, input_dim, mid_dim, output_dim):
    """Deterministic init mimicking PyTorch nn.Linear / nn.BatchNorm1d defaults."""
    def linear(key, fan_in, fan_out):
        k_w, k_b = jax.random.split(key)
        bound = 1.0 / jnp.sqrt(fan_in)
        w = jax.random.uniform(k_w, (fan_in, fan_out), jnp.float32, -bound, bound)
        b = jax.random.uniform(k_b, (1, fan_out), jnp.float32, -bound, bound)
        return w, b

    k1, k2, k3 = jax.random.split(key, 3)
    w1, b1 = linear(k1, input_dim, mid_dim)
    w2, b2 = linear(k2, mid_dim, mid_dim)
    w3, b3 = linear(k3, mid_dim, output_dim)
    ones = jnp.ones((1, mid_dim), jnp.float32)
    zeros = jnp.zeros((1, mid_dim), jnp.float32)
    return dict(w1=w1, b1=b1, g1=ones, be1=zeros,
                w2=w2, b2=b2, g2=ones, be2=zeros,
                w3=w3, b3=b3)


def reference_forward(x, p):
    """Pure-JAX reference with the original math (biases included, two-pass
    variance, exact softmax) — validates the in-kernel algebraic shortcuts."""
    def bn_relu(h, g, b):
        m = jnp.mean(h, axis=0, keepdims=True)
        v = jnp.mean((h - m) ** 2, axis=0, keepdims=True)
        return jnp.maximum((h - m) / jnp.sqrt(v + EPS) * g + b, 0.0)
    h1 = bn_relu(x @ p["w1"] + p["b1"], p["g1"], p["be1"])
    h2 = bn_relu(h1 @ p["w2"] + p["b2"], p["g2"], p["be2"])
    return jax.nn.softmax(h2 @ p["w3"] + p["b3"], axis=-1)


# --------------------------------------------------------------------- main
if __name__ == "__main__":
    key = jax.random.PRNGKey(0)
    k_x, k_p, k_x2 = jax.random.split(key, 3)

    # Small shapes consistent with the module: batch=8, in=16, mid=32, out=8.
    B, input_dim, mid_dim, output_dim = 8, 16, 32, 8
    x = jax.random.normal(k_x, (B, input_dim), jnp.float32)
    params = init_params(k_p, input_dim, mid_dim, output_dim)
    ref = reference_forward(x, params)

    # 1) Fast path (single fused invocation, everything VMEM-resident).
    out = jax.block_until_ready(perceptron_forward(x, params))
    assert out.shape == (B, output_dim)
    assert jnp.allclose(out, ref, atol=1e-4, rtol=1e-4), "fast path mismatch"
    assert jnp.allclose(jnp.sum(out, axis=-1), 1.0, atol=1e-5), "softmax rows"

    # 2) Tiled 3-sweep path with activation stash, ragged batch (row masking).
    B2 = 50
    x2 = jax.random.normal(k_x2, (B2, input_dim), jnp.float32)
    ref2 = reference_forward(x2, params)
    out2 = jax.block_until_ready(
        perceptron_forward(x2, params, batch_tile=16, force_tiled=True))
    assert out2.shape == (B2, output_dim)
    assert jnp.allclose(out2, ref2, atol=1e-4, rtol=1e-4), "tiled path mismatch"
    assert jnp.allclose(jnp.sum(out2, axis=-1), 1.0, atol=1e-5), "softmax rows"

    # 3) bf16 compute dtype (MXU-native); f32 statistics, loose tolerance.
    out_bf = jax.block_until_ready(
        perceptron_forward(x, params, compute_dtype=jnp.bfloat16))
    assert out_bf.shape == (B, output_dim)
    assert jnp.allclose(out_bf, ref, atol=5e-2), "bf16 path mismatch"

    print("KERNEL_OK")
</pallas_src>

<mosaic_0001>
module attributes {stable_mosaic.version = 11 : i64} {
  func.func @_fused_kernel(%arg0: memref<8x128xf32, #tpu.memory_space<vmem>>, %arg1: memref<128x128xf32, #tpu.memory_space<vmem>>, %arg2: memref<1x128xf32, #tpu.memory_space<vmem>>, %arg3: memref<1x128xf32, #tpu.memory_space<vmem>>, %arg4: memref<128x128xf32, #tpu.memory_space<vmem>>, %arg5: memref<1x128xf32, #tpu.memory_space<vmem>>, %arg6: memref<1x128xf32, #tpu.memory_space<vmem>>, %arg7: memref<128x128xf32, #tpu.memory_space<vmem>>, %arg8: memref<1x128xf32, #tpu.memory_space<vmem>>, %arg9: memref<8x128xf32, #tpu.memory_space<vmem>>) attributes {dimension_semantics = [], scalar_prefetch = 0 : i64, scratch_operands = 0 : i64, tpu.core_type = #tpu.core_type<tc>} {
    %c0 = arith.constant 0 : index
    %c0_0 = arith.constant 0 : index
    %0 = vector.load %arg0[%c0, %c0_0] : memref<8x128xf32, #tpu.memory_space<vmem>>, vector<8x128xf32>
    %c0_1 = arith.constant 0 : index
    %c0_2 = arith.constant 0 : index
    %1 = vector.load %arg1[%c0_1, %c0_2] : memref<128x128xf32, #tpu.memory_space<vmem>>, vector<128x128xf32>
    %cst = arith.constant dense<0.000000e+00> : vector<8x128xf32>
    %2 = tpu.matmul %0, %1, %cst {dimension_numbers = #tpu.dot_dimension_numbers<[1], [0], [0], [1], [0, 0, 1, 1], [], []>} : vector<8x128xf32>, vector<128x128xf32>, vector<8x128xf32> -> vector<8x128xf32>
    %cst_3 = arith.constant dense<0.000000e+00> : vector<128xf32>
    %3 = vector.multi_reduction <add>, %2, %cst_3 [0] : vector<8x128xf32> to vector<128xf32>
    %4 = vector.shape_cast %3 : vector<128xf32> to vector<1x128xf32>
    %cst_4 = arith.constant 1.250000e-01 : f32
    %5 = vector.broadcast %cst_4 : f32 to vector<1x128xf32>
    %6 = arith.mulf %4, %5 : vector<1x128xf32>
    %7 = vector.broadcast %6 : vector<1x128xf32> to vector<8x128xf32>
    %8 = arith.subf %2, %7 : vector<8x128xf32>
    %9 = arith.mulf %8, %8 : vector<8x128xf32>
    %cst_5 = arith.constant dense<0.000000e+00> : vector<128xf32>
    %10 = vector.multi_reduction <add>, %9, %cst_5 [0] : vector<8x128xf32> to vector<128xf32>
    %11 = vector.shape_cast %10 : vector<128xf32> to vector<1x128xf32>
    %cst_6 = arith.constant 1.250000e-01 : f32
    %12 = vector.broadcast %cst_6 : f32 to vector<1x128xf32>
    %13 = arith.mulf %11, %12 : vector<1x128xf32>
    %c0_7 = arith.constant 0 : index
    %c0_8 = arith.constant 0 : index
    %14 = vector.load %arg2[%c0_7, %c0_8] : memref<1x128xf32, #tpu.memory_space<vmem>>, vector<1x128xf32>
    %cst_9 = arith.constant 9.99999974E-6 : f32
    %15 = vector.broadcast %cst_9 : f32 to vector<1x128xf32>
    %16 = arith.addf %13, %15 : vector<1x128xf32>
    %17 = math.rsqrt %16 : vector<1x128xf32>
    %18 = arith.mulf %14, %17 : vector<1x128xf32>
    %19 = vector.broadcast %18 : vector<1x128xf32> to vector<8x128xf32>
    %20 = arith.mulf %8, %19 : vector<8x128xf32>
    %c0_10 = arith.constant 0 : index
    %c0_11 = arith.constant 0 : index
    %21 = vector.load %arg3[%c0_10, %c0_11] : memref<1x128xf32, #tpu.memory_space<vmem>>, vector<1x128xf32>
    %22 = vector.broadcast %21 : vector<1x128xf32> to vector<8x128xf32>
    %23 = arith.addf %20, %22 : vector<8x128xf32>
    %cst_12 = arith.constant 0.000000e+00 : f32
    %24 = vector.broadcast %cst_12 : f32 to vector<8x128xf32>
    %25 = arith.maximumf %23, %24 : vector<8x128xf32>
    %c0_13 = arith.constant 0 : index
    %c0_14 = arith.constant 0 : index
    %26 = vector.load %arg4[%c0_13, %c0_14] : memref<128x128xf32, #tpu.memory_space<vmem>>, vector<128x128xf32>
    %cst_15 = arith.constant dense<0.000000e+00> : vector<8x128xf32>
    %27 = tpu.matmul %25, %26, %cst_15 {dimension_numbers = #tpu.dot_dimension_numbers<[1], [0], [0], [1], [0, 0, 1, 1], [], []>} : vector<8x128xf32>, vector<128x128xf32>, vector<8x128xf32> -> vector<8x128xf32>
    %cst_16 = arith.constant dense<0.000000e+00> : vector<128xf32>
    %28 = vector.multi_reduction <add>, %27, %cst_16 [0] : vector<8x128xf32> to vector<128xf32>
    %29 = vector.shape_cast %28 : vector<128xf32> to vector<1x128xf32>
    %cst_17 = arith.constant 1.250000e-01 : f32
    %30 = vector.broadcast %cst_17 : f32 to vector<1x128xf32>
    %31 = arith.mulf %29, %30 : vector<1x128xf32>
    %32 = vector.broadcast %31 : vector<1x128xf32> to vector<8x128xf32>
    %33 = arith.subf %27, %32 : vector<8x128xf32>
    %34 = arith.mulf %33, %33 : vector<8x128xf32>
    %cst_18 = arith.constant dense<0.000000e+00> : vector<128xf32>
    %35 = vector.multi_reduction <add>, %34, %cst_18 [0] : vector<8x128xf32> to vector<128xf32>
    %36 = vector.shape_cast %35 : vector<128xf32> to vector<1x128xf32>
    %cst_19 = arith.constant 1.250000e-01 : f32
    %37 = vector.broadcast %cst_19 : f32 to vector<1x128xf32>
    %38 = arith.mulf %36, %37 : vector<1x128xf32>
    %c0_20 = arith.constant 0 : index
    %c0_21 = arith.constant 0 : index
    %39 = vector.load %arg5[%c0_20, %c0_21] : memref<1x128xf32, #tpu.memory_space<vmem>>, vector<1x128xf32>
    %cst_22 = arith.constant 9.99999974E-6 : f32
    %40 = vector.broadcast %cst_22 : f32 to vector<1x128xf32>
    %41 = arith.addf %38, %40 : vector<1x128xf32>
    %42 = math.rsqrt %41 : vector<1x128xf32>
    %43 = arith.mulf %39, %42 : vector<1x128xf32>
    %44 = vector.broadcast %43 : vector<1x128xf32> to vector<8x128xf32>
    %45 = arith.mulf %33, %44 : vector<8x128xf32>
    %c0_23 = arith.constant 0 : index
    %c0_24 = arith.constant 0 : index
    %46 = vector.load %arg6[%c0_23, %c0_24] : memref<1x128xf32, #tpu.memory_space<vmem>>, vector<1x128xf32>
    %47 = vector.broadcast %46 : vector<1x128xf32> to vector<8x128xf32>
    %48 = arith.addf %45, %47 : vector<8x128xf32>
    %cst_25 = arith.constant 0.000000e+00 : f32
    %49 = vector.broadcast %cst_25 : f32 to vector<8x128xf32>
    %50 = arith.maximumf %48, %49 : vector<8x128xf32>
    %c0_26 = arith.constant 0 : index
    %c0_27 = arith.constant 0 : index
    %51 = vector.load %arg7[%c0_26, %c0_27] : memref<128x128xf32, #tpu.memory_space<vmem>>, vector<128x128xf32>
    %cst_28 = arith.constant dense<0.000000e+00> : vector<8x128xf32>
    %52 = tpu.matmul %50, %51, %cst_28 {dimension_numbers = #tpu.dot_dimension_numbers<[1], [0], [0], [1], [0, 0, 1, 1], [], []>} : vector<8x128xf32>, vector<128x128xf32>, vector<8x128xf32> -> vector<8x128xf32>
    %c0_29 = arith.constant 0 : index
    %c0_30 = arith.constant 0 : index
    %53 = vector.load %arg8[%c0_29, %c0_30] : memref<1x128xf32, #tpu.memory_space<vmem>>, vector<1x128xf32>
    %54 = vector.broadcast %53 : vector<1x128xf32> to vector<8x128xf32>
    %55 = arith.addf %52, %54 : vector<8x128xf32>
    %56 = tpu.iota {dimensions = array<i32: 1>} : vector<8x128xi32>
    %c8_i32 = arith.constant 8 : i32
    %57 = vector.broadcast %c8_i32 : i32 to vector<8x128xi32>
    %58 = arith.cmpi slt, %56, %57 : vector<8x128xi32>
    %cst_31 = arith.constant -1.000000e+30 : f32
    %59 = vector.broadcast %cst_31 : f32 to vector<8x128xf32>
    %60 = arith.select %58, %55, %59 : vector<8x128xi1>, vector<8x128xf32>
    %cst_32 = arith.constant dense<0xFF800000> : vector<8xf32>
    %61 = vector.multi_reduction <maximumf>, %60, %cst_32 [1] : vector<8x128xf32> to vector<8xf32>
    %62 = vector.shape_cast %61 : vector<8xf32> to vector<8x1xf32>
    %63 = vector.broadcast %62 : vector<8x1xf32> to vector<8x128xf32>
    %64 = arith.subf %60, %63 : vector<8x128xf32>
    %65 = math.exp %64 : vector<8x128xf32>
    %cst_33 = arith.constant dense<0.000000e+00> : vector<8xf32>
    %66 = vector.multi_reduction <add>, %65, %cst_33 [1] : vector<8x128xf32> to vector<8xf32>
    %67 = vector.shape_cast %66 : vector<8xf32> to vector<8x1xf32>
    %68 = tpu.reciprocal %67 {approx = true} : vector<8x1xf32> -> vector<8x1xf32>
    %69 = arith.mulf %67, %68 : vector<8x1xf32>
    %cst_34 = arith.constant 2.000000e+00 : f32
    %70 = vector.broadcast %cst_34 : f32 to vector<8x1xf32>
    %71 = arith.subf %70, %69 : vector<8x1xf32>
    %72 = arith.mulf %68, %71 : vector<8x1xf32>
    %73 = vector.broadcast %72 : vector<8x1xf32> to vector<8x128xf32>
    %74 = arith.mulf %65, %73 : vector<8x128xf32>
    %c0_35 = arith.constant 0 : index
    %c0_36 = arith.constant 0 : index
    %75 = vector.load %arg9[%c0_35, %c0_36] : memref<8x128xf32, #tpu.memory_space<vmem>>, vector<8x128xf32>
    tpu.vector_store %arg9[%c0_35, %c0_36], %74 {strides = array<i32>} : memref<8x128xf32, #tpu.memory_space<vmem>>, vector<8x128xf32>,
    return
  }
}

</mosaic_0001>

<llo_original>
// kernel: tpu_custom_call.1
$region0: #{tpu_custom_call.1}
  #allocation0 [shape = 'u32[]', space=smem, size = 0x4, offset = 0x4, fixed_abs, tag = 'smem constant byte address 0x4 - core index']
  #allocation1 [shape = 'u32[72,128]{1,0:T(1,128)}', space=vmem, size = 0x9000, scoped, tag = 'internal scratch']
  %s0 = inlined_call_operand.hbm [shape: f32[8,128], index: 0, kind: input, shape index: {}]
  %s1 = inlined_call_operand.hbm [shape: f32[128,128], index: 1, kind: input, shape index: {}]
  %s2 = inlined_call_operand.vmem [shape: f32[1,128], index: 2, kind: input, shape index: {}]
  %s3 = inlined_call_operand.vmem [shape: f32[1,128], index: 3, kind: input, shape index: {}]
  %s4 = inlined_call_operand.hbm [shape: f32[128,128], index: 4, kind: input, shape index: {}]
  %s5 = inlined_call_operand.vmem [shape: f32[1,128], index: 5, kind: input, shape index: {}]
  %s6 = inlined_call_operand.vmem [shape: f32[1,128], index: 6, kind: input, shape index: {}]
  %s7 = inlined_call_operand.hbm [shape: f32[128,128], index: 7, kind: input, shape index: {}]
  %s8 = inlined_call_operand.vmem [shape: f32[1,128], index: 8, kind: input, shape index: {}]
  %s9 = inlined_call_operand.hbm [shape: f32[8,128], index: 9, kind: output, shape index: {}]
  %s10 = sld [smem:[#allocation0]]
  $region62: #{tpu_custom_call.1} parent=0
    _
  %s12 = ssub.s32 1, %s10
  %s13 = scalar_select 0, %s12, %s10
  $region1: #{tpu_custom_call.1} parent=0
    #allocation2 [shape = 'u8[4096]{0}', space=vmem, size = 0x1000, scoped, tag = 'input window, operand 0, single buffered']
    #allocation3 [shape = 's32[1]{0}', space=sflag, size = 0x4, scoped, tag = 'scoped memory for tpu_custom_call.1']
    #allocation4 [shape = 's32[1]{0}', space=sflag, size = 0x4, scoped, tag = 'scoped memory for tpu_custom_call.1']
    #allocation5 [shape = 'u8[65536]{0}', space=vmem, size = 0x10000, scoped, tag = 'input window, operand 1, single buffered']
    #allocation6 [shape = 's32[1]{0}', space=sflag, size = 0x4, scoped, tag = 'scoped memory for tpu_custom_call.1']
    #allocation7 [shape = 'u8[65536]{0}', space=vmem, size = 0x10000, scoped, tag = 'input window, operand 4, single buffered']
    #allocation8 [shape = 'u8[65536]{0}', space=vmem, size = 0x10000, scoped, tag = 'input window, operand 7, single buffered']
    #allocation9 [shape = 's32[1]{0}', space=sflag, size = 0x4, scoped, tag = 'scoped memory for tpu_custom_call.1']
    #allocation10 [shape = 'u8[4096]{0}', space=vmem, size = 0x1000, scoped, tag = 'output window, operand 0, single buffered']
    %14 = vsyncpa [#allocation3], 0
    %15 = vsyncpa [#allocation6], 0
    %16 = vsyncpa [#allocation9], 0
    %17 = vsyncpa [#allocation4], 0
    // Predicated region
    $region2: #{tpu_custom_call.1} parent=1 // pred_check
      _
    $region3: #{tpu_custom_call.1} parent=1 // pred_check_branch
      %19 = sbr.rel (0) target = $region5
    $region4: #{tpu_custom_call.1} parent=1 // pred_region
      %21 = vsyncadd [#allocation3], 0
      %s23 = sshll.u32 %s0, 4
      %s24 = int_to_ptr.hbm [resolvable:$true] %s23
      %s25 = sshll.u32 [#allocation2], 4
      %s26 = int_to_ptr.vmem [resolvable:$true] %s25
      %28 = dma.hbm_to_vmem [thread:$0]  %s24, 128, %s26, [#allocation3]
    $region5: #{tpu_custom_call.1} parent=1 // pred_fallthru
      _
    // Predicated region
    $region6: #{tpu_custom_call.1} parent=1 // pred_check
      _
    $region7: #{tpu_custom_call.1} parent=1 // pred_check_branch
      %30 = sbr.rel (0) target = $region9
    $region8: #{tpu_custom_call.1} parent=1 // pred_region
      %32 = vsyncadd [#allocation6], 0
      %s33 = sshll.u32 %s1, 4
      %s34 = int_to_ptr.hbm [resolvable:$true] %s33
      %s35 = sshll.u32 [#allocation5], 4
      %s36 = int_to_ptr.vmem [resolvable:$true] %s35
      %41 = dma.hbm_to_vmem [thread:$0]  %s34, 2048, %s36, [#allocation6], 128, 128, 8
    $region9: #{tpu_custom_call.1} parent=1 // pred_fallthru
      _
    // Predicated region
    $region10: #{tpu_custom_call.1} parent=1 // pred_check
      _
    $region11: #{tpu_custom_call.1} parent=1 // pred_check_branch
      %43 = sbr.rel (0) target = $region13
    $region12: #{tpu_custom_call.1} parent=1 // pred_region
      _
    $region13: #{tpu_custom_call.1} parent=1 // pred_fallthru
      _
    // Predicated region
    $region14: #{tpu_custom_call.1} parent=1 // pred_check
      _
    $region15: #{tpu_custom_call.1} parent=1 // pred_check_branch
      %45 = sbr.rel (0) target = $region17
    $region16: #{tpu_custom_call.1} parent=1 // pred_region
      _
    $region17: #{tpu_custom_call.1} parent=1 // pred_fallthru
      _
    // Predicated region
    $region18: #{tpu_custom_call.1} parent=1 // pred_check
      _
    $region19: #{tpu_custom_call.1} parent=1 // pred_check_branch
      %47 = sbr.rel (0) target = $region21
    $region20: #{tpu_custom_call.1} parent=1 // pred_region
      %49 = vsyncadd [#allocation6], 0
      %s50 = sshll.u32 %s4, 4
      %s51 = int_to_ptr.hbm [resolvable:$true] %s50
      %s52 = sshll.u32 [#allocation7], 4
      %s53 = int_to_ptr.vmem [resolvable:$true] %s52
      %58 = dma.hbm_to_vmem [thread:$0]  %s51, 2048, %s53, [#allocation6], 128, 128, 8
    $region21: #{tpu_custom_call.1} parent=1 // pred_fallthru
      _
    // Predicated region
    $region22: #{tpu_custom_call.1} parent=1 // pred_check
      _
    $region23: #{tpu_custom_call.1} parent=1 // pred_check_branch
      %60 = sbr.rel (0) target = $region25
    $region24: #{tpu_custom_call.1} parent=1 // pred_region
      _
    $region25: #{tpu_custom_call.1} parent=1 // pred_fallthru
      _
    // Predicated region
    $region26: #{tpu_custom_call.1} parent=1 // pred_check
      _
    $region27: #{tpu_custom_call.1} parent=1 // pred_check_branch
      %62 = sbr.rel (0) target = $region29
    $region28: #{tpu_custom_call.1} parent=1 // pred_region
      _
    $region29: #{tpu_custom_call.1} parent=1 // pred_fallthru
      _
    // Predicated region
    $region30: #{tpu_custom_call.1} parent=1 // pred_check
      _
    $region31: #{tpu_custom_call.1} parent=1 // pred_check_branch
      %64 = sbr.rel (0) target = $region33
    $region32: #{tpu_custom_call.1} parent=1 // pred_region
      %66 = vsyncadd [#allocation9], 0
      %s67 = sshll.u32 %s7, 4
      %s68 = int_to_ptr.hbm [resolvable:$true] %s67
      %s69 = sshll.u32 [#allocation8], 4
      %s70 = int_to_ptr.vmem [resolvable:$true] %s69
      %75 = dma.hbm_to_vmem [thread:$0]  %s68, 2048, %s70, [#allocation9], 128, 128, 8
    $region33: #{tpu_custom_call.1} parent=1 // pred_fallthru
      _
    // Predicated region
    $region34: #{tpu_custom_call.1} parent=1 // pred_check
      _
    $region35: #{tpu_custom_call.1} parent=1 // pred_check_branch
      %77 = sbr.rel (0) target = $region37
    $region36: #{tpu_custom_call.1} parent=1 // pred_region
      _
    $region37: #{tpu_custom_call.1} parent=1 // pred_fallthru
      _
    // Predicated region
    $region38: #{tpu_custom_call.1} parent=1 // pred_check
      _
    $region39: #{tpu_custom_call.1} parent=1 // pred_check_branch
      %79 = sbr.rel (0) target = $region41
    $region40: #{tpu_custom_call.1} parent=1 // pred_region
      %81 = dma.done [#allocation3], 128
    $region41: #{tpu_custom_call.1} parent=1 // pred_fallthru
      _
    // Predicated region
    $region42: #{tpu_custom_call.1} parent=1 // pred_check
      _
    $region43: #{tpu_custom_call.1} parent=1 // pred_check_branch
      %83 = sbr.rel (0) target = $region45
    $region44: #{tpu_custom_call.1} parent=1 // pred_region
      %85 = dma.done [#allocation6], 2048
    $region45: #{tpu_custom_call.1} parent=1 // pred_fallthru
      _
    // Predicated region
    $region46: #{tpu_custom_call.1} parent=1 // pred_check
      _
    $region47: #{tpu_custom_call.1} parent=1 // pred_check_branch
      %87 = sbr.rel (0) target = $region49
    $region48: #{tpu_custom_call.1} parent=1 // pred_region
      %89 = dma.done [#allocation6], 2048
    $region49: #{tpu_custom_call.1} parent=1 // pred_fallthru
      _
    // Predicated region
    $region50: #{tpu_custom_call.1} parent=1 // pred_check
      _
    $region51: #{tpu_custom_call.1} parent=1 // pred_check_branch
      %91 = sbr.rel (0) target = $region53
    $region52: #{tpu_custom_call.1} parent=1 // pred_region
      %93 = dma.done [#allocation9], 2048
    $region53: #{tpu_custom_call.1} parent=1 // pred_fallthru
      _
    %v94 = vld [vmem:[#allocation2] sm:$0xff]
    %v95 = vld [vmem:[#allocation5] sm:$0xff]
    %v96 = vld [vmem:[#allocation5 + $0x8] sm:$0xff]
    %v97 = vld [vmem:[#allocation5 + $0x10] sm:$0xff]
    %v98 = vld [vmem:[#allocation5 + $0x18] sm:$0xff]
    %v99 = vld [vmem:[#allocation5 + $0x20] sm:$0xff]
    %v100 = vld [vmem:[#allocation5 + $0x28] sm:$0xff]
    %v101 = vld [vmem:[#allocation5 + $0x30] sm:$0xff]
    %v102 = vld [vmem:[#allocation5 + $0x38] sm:$0xff]
    %v103 = vld [vmem:[#allocation5 + $0x40] sm:$0xff]
    %v104 = vld [vmem:[#allocation5 + $0x48] sm:$0xff]
    %v105 = vld [vmem:[#allocation5 + $0x50] sm:$0xff]
    %v106 = vld [vmem:[#allocation5 + $0x58] sm:$0xff]
    %v107 = vld [vmem:[#allocation5 + $0x60] sm:$0xff]
    %v108 = vld [vmem:[#allocation5 + $0x68] sm:$0xff]
    %v109 = vld [vmem:[#allocation5 + $0x70] sm:$0xff]
    %v110 = vld [vmem:[#allocation5 + $0x78] sm:$0xff]
    %111 = vmatpush.msra.mxu0 %v110
    %112 = vmatpush.msra.mxu0 %v109
    %113 = vmatpush.msra.mxu0 %v108
    %114 = vmatpush.msra.mxu0 %v107
    %115 = vmatpush.msra.mxu0 %v106
    %116 = vmatpush.msra.mxu0 %v105
    %117 = vmatpush.msra.mxu0 %v104
    %118 = vmatpush.msra.mxu0 %v103
    %119 = vmatpush.msra.mxu0 %v102
    %120 = vmatpush.msra.mxu0 %v101
    %121 = vmatpush.msra.mxu0 %v100
    %122 = vmatpush.msra.mxu0 %v99
    %123 = vmatpush.msra.mxu0 %v98
    %124 = vmatpush.msra.mxu0 %v97
    %125 = vmatpush.msra.mxu0 %v96
    %126 = vmatpush.msra.mxu0 %v95
    %127 = vmatmul.f32.gmra.mxu0 %v94
    %v128 = vpop.f32.mrf.mxu0
    %v129 = vadd.f32 0.0, %v128
    %130 = vdwg.mxu0
    %v131 = vrot.slane %v129, 4
    %v132 = vadd.f32 %v129, %v131
    %v133 = vrot.slane %v132, 2
    %v134 = vadd.f32 %v132, %v133
    %v135 = vrot.slane %v134, 1
    %v136 = vadd.f32 %v134, %v135
    %v137 = vmul.f32 %v136, 0.125
    %v138 = vsub.f32 %v129, %v137
    %v139 = vmul.f32 %v138, %v138
    %v140 = vrot.slane %v139, 4
    %v141 = vadd.f32 %v139, %v140
    %v142 = vrot.slane %v141, 2
    %v143 = vadd.f32 %v141, %v142
    %v144 = vrot.slane %v143, 1
    %v145 = vadd.f32 %v143, %v144
    %v146 = vmul.f32 %v145, 0.125
    %v147 = vld [vmem:[%s2] sm:$0x1]
    %v148 = vadd.f32 %v146, 1e-05
    %v149 = vrsqrt.pop %v148
    %v150 = vmul.f32 %v149, %v148
    %v151 = vmul.f32 %v150, %v149
    %v152 = vmul.f32 0.5, %v151
    %v153 = vsub.f32 1.5, %v152
    %v154 = vmul.f32 %v149, %v153
    %vm155 = vweird.f32 %v148
    %vm156 = vweird.f32 %v149
    %vm157 = vmor %vm155, %vm156
    %v158 = vsel %vm157, %v149, %v154
    %v159 = vmul.f32 %v147, %v158
    %v161 = vperm.slane %v159, 0
    %v163 = vmul.f32 %v138, %v161
    %v164 = vld [vmem:[%s3] sm:$0x1]
    %v166 = vperm.slane %v164, 0
    %v168 = vadd.f32 %v163, %v166
    %v169 = vmax.f32 %v168, 0.0
    %v170 = vld [vmem:[#allocation7] sm:$0xff]
    %v171 = vld [vmem:[#allocation7 + $0x8] sm:$0xff]
    %v172 = vld [vmem:[#allocation7 + $0x10] sm:$0xff]
    %v173 = vld [vmem:[#allocation7 + $0x18] sm:$0xff]
    %v174 = vld [vmem:[#allocation7 + $0x20] sm:$0xff]
    %v175 = vld [vmem:[#allocation7 + $0x28] sm:$0xff]
    %v176 = vld [vmem:[#allocation7 + $0x30] sm:$0xff]
    %v177 = vld [vmem:[#allocation7 + $0x38] sm:$0xff]
    %v178 = vld [vmem:[#allocation7 + $0x40] sm:$0xff]
    %v179 = vld [vmem:[#allocation7 + $0x48] sm:$0xff]
    %v180 = vld [vmem:[#allocation7 + $0x50] sm:$0xff]
    %v181 = vld [vmem:[#allocation7 + $0x58] sm:$0xff]
    %v182 = vld [vmem:[#allocation7 + $0x60] sm:$0xff]
    %v183 = vld [vmem:[#allocation7 + $0x68] sm:$0xff]
    %v184 = vld [vmem:[#allocation7 + $0x70] sm:$0xff]
    %v185 = vld [vmem:[#allocation7 + $0x78] sm:$0xff]
    %186 = vmatpush.msra.mxu0 %v185
    %187 = vmatpush.msra.mxu0 %v184
    %188 = vmatpush.msra.mxu0 %v183
    %189 = vmatpush.msra.mxu0 %v182
    %190 = vmatpush.msra.mxu0 %v181
    %191 = vmatpush.msra.mxu0 %v180
    %192 = vmatpush.msra.mxu0 %v179
    %193 = vmatpush.msra.mxu0 %v178
    %194 = vmatpush.msra.mxu0 %v177
    %195 = vmatpush.msra.mxu0 %v176
    %196 = vmatpush.msra.mxu0 %v175
    %197 = vmatpush.msra.mxu0 %v174
    %198 = vmatpush.msra.mxu0 %v173
    %199 = vmatpush.msra.mxu0 %v172
    %200 = vmatpush.msra.mxu0 %v171
    %201 = vmatpush.msra.mxu0 %v170
    %202 = vmatmul.f32.gmra.mxu0 %v169
    %v203 = vpop.f32.mrf.mxu0
    %v204 = vadd.f32 0.0, %v203
    %205 = vdwg.mxu0
    %v206 = vrot.slane %v204, 4
    %v207 = vadd.f32 %v204, %v206
    %v208 = vrot.slane %v207, 2
    %v209 = vadd.f32 %v207, %v208
    %v210 = vrot.slane %v209, 1
    %v211 = vadd.f32 %v209, %v210
    %v212 = vmul.f32 %v211, 0.125
    %v213 = vsub.f32 %v204, %v212
    %v214 = vmul.f32 %v213, %v213
    %v215 = vrot.slane %v214, 4
    %v216 = vadd.f32 %v214, %v215
    %v217 = vrot.slane %v216, 2
    %v218 = vadd.f32 %v216, %v217
    %v219 = vrot.slane %v218, 1
    %v220 = vadd.f32 %v218, %v219
    %v221 = vmul.f32 %v220, 0.125
    %v222 = vld [vmem:[%s5] sm:$0x1]
    %v223 = vadd.f32 %v221, 1e-05
    %v224 = vrsqrt.pop %v223
    %v225 = vmul.f32 %v224, %v223
    %v226 = vmul.f32 %v225, %v224
    %v227 = vmul.f32 0.5, %v226
    %v228 = vsub.f32 1.5, %v227
    %v229 = vmul.f32 %v224, %v228
    %vm230 = vweird.f32 %v223
    %vm231 = vweird.f32 %v224
    %vm232 = vmor %vm230, %vm231
    %v233 = vsel %vm232, %v224, %v229
    %v234 = vmul.f32 %v222, %v233
    %v236 = vperm.slane %v234, 0
    %v238 = vmul.f32 %v213, %v236
    %v239 = vld [vmem:[%s6] sm:$0x1]
    %v241 = vperm.slane %v239, 0
    %v243 = vadd.f32 %v238, %v241
    %v244 = vmax.f32 %v243, 0.0
    %v245 = vld [vmem:[#allocation8] sm:$0xff]
    %v246 = vld [vmem:[#allocation8 + $0x8] sm:$0xff]
    %v247 = vld [vmem:[#allocation8 + $0x10] sm:$0xff]
    %v248 = vld [vmem:[#allocation8 + $0x18] sm:$0xff]
    %v249 = vld [vmem:[#allocation8 + $0x20] sm:$0xff]
    %v250 = vld [vmem:[#allocation8 + $0x28] sm:$0xff]
    %v251 = vld [vmem:[#allocation8 + $0x30] sm:$0xff]
    %v252 = vld [vmem:[#allocation8 + $0x38] sm:$0xff]
    %v253 = vld [vmem:[#allocation8 + $0x40] sm:$0xff]
    %v254 = vld [vmem:[#allocation8 + $0x48] sm:$0xff]
    %v255 = vld [vmem:[#allocation8 + $0x50] sm:$0xff]
    %v256 = vld [vmem:[#allocation8 + $0x58] sm:$0xff]
    %v257 = vld [vmem:[#allocation8 + $0x60] sm:$0xff]
    %v258 = vld [vmem:[#allocation8 + $0x68] sm:$0xff]
    %v259 = vld [vmem:[#allocation8 + $0x70] sm:$0xff]
    %v260 = vld [vmem:[#allocation8 + $0x78] sm:$0xff]
    %v261 = vld [vmem:[%s8] sm:$0x1]
    %v263 = vperm.slane %v261, 0
    %265 = vmatpush.msra.mxu0 %v260
    %266 = vmatpush.msra.mxu0 %v259
    %267 = vmatpush.msra.mxu0 %v258
    %268 = vmatpush.msra.mxu0 %v257
    %269 = vmatpush.msra.mxu0 %v256
    %270 = vmatpush.msra.mxu0 %v255
    %271 = vmatpush.msra.mxu0 %v254
    %272 = vmatpush.msra.mxu0 %v253
    %273 = vmatpush.msra.mxu0 %v252
    %274 = vmatpush.msra.mxu0 %v251
    %275 = vmatpush.msra.mxu0 %v250
    %276 = vmatpush.msra.mxu0 %v249
    %277 = vmatpush.msra.mxu0 %v248
    %278 = vmatpush.msra.mxu0 %v247
    %279 = vmatpush.msra.mxu0 %v246
    %280 = vmatpush.msra.mxu0 %v245
    %281 = vmatmul.f32.gmra.mxu0 %v244
    %v282 = vpop.f32.mrf.mxu0
    %v283 = vadd.f32 %v263, %v282
    %284 = vdwg.mxu0
    %v285 = vlaneseq
    %v286 = vand.u32 %v285, 127
    %vm287 = vcmp.lt.s32.totalorder %v286, 8
    %v288 = vsel %vm287, %v283, -1e+30
    %289 = vmax.xlane.f32.xlu0 %v288
    %v290 = vpop.xlane.xlu0 %289
    %v291 = vsub.f32 %v288, %v290
    %v292 = vmul.f32 %v291, 1.442695
    %v293 = vpow.pop %v292
    %294 = vadd.xlane.f32.xlu0 %v293
    %v295 = vpop.xlane.xlu0 %294
    %v296 = vrcp.pop %v295
    %v297 = vmul.f32 %v295, %v296
    %v298 = vsub.f32 2.0, %v297
    %v299 = vmul.f32 %v296, %v298
    %v300 = vmul.f32 %v293, %v299
    %301 = vst [vmem:[#allocation10] sm:$0xff] %v300
    // Predicated region
    $region54: #{tpu_custom_call.1} parent=1 // pred_check
      _
    $region55: #{tpu_custom_call.1} parent=1 // pred_check_branch
      %303 = sbr.rel (0) target = $region57
    $region56: #{tpu_custom_call.1} parent=1 // pred_region
      %305 = vsyncadd [#allocation4], 0
      %s307 = sshll.u32 [#allocation10], 4
      %s308 = int_to_ptr.vmem [resolvable:$true] %s307
      %s309 = sshll.u32 %s9, 4
      %s310 = int_to_ptr.hbm [resolvable:$true] %s309
      %312 = dma.vmem_to_hbm [thread:$0]  %s308, 128, %s310, [#allocation4]
    $region57: #{tpu_custom_call.1} parent=1 // pred_fallthru
      _
    // Predicated region
    $region58: #{tpu_custom_call.1} parent=1 // pred_check
      _
    $region59: #{tpu_custom_call.1} parent=1 // pred_check_branch
      %314 = sbr.rel (0) target = $region61
    $region60: #{tpu_custom_call.1} parent=1 // pred_region
      %316 = dma.done [#allocation4], 128
    $region61: #{tpu_custom_call.1} parent=1 // pred_fallthru
      _
    %317 = vsyncpa [#allocation3], 1
    %318 = vsyncpa [#allocation6], 1
    %319 = vsyncpa [#allocation9], 1
    %320 = vsyncpa [#allocation4], 1

</llo_original>
